<compile_context>
chip_gen: v7x
topology: tpu7x:2x2x1
jax: 0.10.0
libtpu: 0.0.40
codegen_flags: <defaults>
</compile_context>

<pallas_src>
import jax
import jax.numpy as jnp
from jax import lax
from jax.experimental import pallas as pl
from jax.experimental.pallas import tpu as pltpu

MAX_NORM = 1.0        # nn.Embedding(max_norm=1.0)
RENORM_EPS = 1e-7     # torch embedding_renorm_ epsilon
TILE_N = 256          # index rows per grid step (>= 256 per perf guidance)
LANE = 128


def _round_up(n, m):
    return (n + m - 1) // m * m


def _make_kernel(inv_keep, keep_threshold, apply_dropout):
    """Gather-via-one-hot-matmul + (optional) inverted dropout."""

    if apply_dropout:
        def kernel(idx_ref, bits_ref, w_ref, o_ref):
            idx = idx_ref[...]                                   # (TILE_N, 1) int32
            tn = idx_ref.shape[0]
            n_lab = w_ref.shape[0]
            labels = lax.broadcasted_iota(jnp.int32, (tn, n_lab), 1)
            one_hot = (idx == labels).astype(w_ref.dtype)        # (TILE_N, L_PAD)
            rows = jnp.dot(one_hot, w_ref[...],
                           preferred_element_type=jnp.float32)   # MXU gather
            # integer-threshold dropout: keep iff bits >= round(p * 2^32)
            keep = bits_ref[...] >= jnp.uint32(keep_threshold)
            rows = jnp.where(keep, rows * inv_keep, 0.0)
            o_ref[...] = rows.astype(o_ref.dtype)
    else:
        def kernel(idx_ref, w_ref, o_ref):
            idx = idx_ref[...]                                   # (TILE_N, 1) int32
            tn = idx_ref.shape[0]
            n_lab = w_ref.shape[0]
            labels = lax.broadcasted_iota(jnp.int32, (tn, n_lab), 1)
            one_hot = (idx == labels).astype(w_ref.dtype)
            rows = jnp.dot(one_hot, w_ref[...],
                           preferred_element_type=jnp.float32)
            o_ref[...] = rows.astype(o_ref.dtype)

    return kernel


def init_label_embed_params(key, n_labels, emb_dim=104, scale=1e-4, eye=False):
    """Deterministic equivalent of LabelEmbedModel.init_weights."""
    if eye:
        return jnp.eye(n_labels, emb_dim, dtype=jnp.float32)
    return jax.random.uniform(
        key, (n_labels, emb_dim), dtype=jnp.float32, minval=-scale, maxval=scale
    )


def label_embed_forward(x, weight, *, dropout_p=0.4, training=True, seed=0):
    """Pallas implementation of LabelEmbedModel.forward(x)."""
    x = jnp.asarray(x)
    orig_shape = x.shape
    flat_idx = x.reshape(-1).astype(jnp.int32)                   # (N,)
    n_rows = int(flat_idx.shape[0])
    n_labels, emb_dim = weight.shape

    n_pad = _round_up(max(n_rows, 1), TILE_N)
    l_pad = _round_up(n_labels, LANE)
    e_pad = _round_up(emb_dim, LANE)

    # ---- max_norm renorm, hoisted out of the per-lookup hot path ----
    # (forward-visible effect of torch's embedding_renorm_: rescale rows whose
    #  L2 norm exceeds max_norm; depends only on the table row.)
    w32 = weight.astype(jnp.float32)
    nrm = jnp.sqrt(jnp.sum(w32 * w32, axis=-1, keepdims=True))
    row_scale = jnp.where(nrm > MAX_NORM, MAX_NORM / (nrm + RENORM_EPS), 1.0)
    w_renorm = (w32 * row_scale).astype(weight.dtype)

    # pad table to (L_PAD, E_PAD) and indices to (N_PAD, 1) -> lane-dense tiles
    table = jnp.zeros((l_pad, e_pad), weight.dtype).at[:n_labels, :emb_dim].set(w_renorm)
    idx2d = jnp.zeros((n_pad, 1), jnp.int32).at[:n_rows, 0].set(flat_idx)

    p = float(dropout_p)
    apply_dropout = bool(training) and p > 0.0
    inv_keep = 1.0 / (1.0 - p) if p < 1.0 else 0.0
    keep_threshold = min(int(round(p * (2 ** 32))), 2 ** 32 - 1)

    kernel = _make_kernel(inv_keep, keep_threshold, apply_dropout)

    grid = (n_pad // TILE_N,)
    idx_spec = pl.BlockSpec((TILE_N, 1), lambda i: (i, 0))
    tbl_spec = pl.BlockSpec((l_pad, e_pad), lambda i: (0, 0))     # VMEM-resident table
    out_spec = pl.BlockSpec((TILE_N, e_pad), lambda i: (i, 0))

    if apply_dropout:
        # one bulk draw of random bits for the whole call (no in-kernel reseeds)
        bits = jax.random.bits(jax.random.PRNGKey(int(seed)),
                               (n_pad, e_pad), dtype=jnp.uint32)
        in_specs = [idx_spec, pl.BlockSpec((TILE_N, e_pad), lambda i: (i, 0)), tbl_spec]
        args = (idx2d, bits, table)
    else:
        in_specs = [idx_spec, tbl_spec]
        args = (idx2d, table)

    out = pl.pallas_call(
        kernel,
        out_shape=jax.ShapeDtypeStruct((n_pad, e_pad), weight.dtype),
        grid=grid,
        in_specs=in_specs,
        out_specs=out_spec,
        compiler_params=pltpu.CompilerParams(dimension_semantics=("parallel",)),
    )(*args)

    out = out[:n_rows, :emb_dim]
    return out.reshape(*orig_shape, emb_dim)


if __name__ == "__main__":
    key = jax.random.PRNGKey(0)
    k_w, k_x = jax.random.split(key)

    n_labels, emb_dim = 32, 104
    batch, seq = 2, 8

    weight = init_label_embed_params(k_w, n_labels, emb_dim, scale=1e-4, eye=False)
    x = jax.random.randint(k_x, (batch, seq), 0, n_labels, dtype=jnp.int32)

    # training path (renorm is a no-op here since row norms << 1)
    out_train = jax.block_until_ready(
        label_embed_forward(x, weight, dropout_p=0.4, training=True, seed=0))
    assert out_train.shape == (batch, seq, emb_dim), out_train.shape
    assert out_train.dtype == jnp.float32

    ref = weight[x]
    kept = ref / (1.0 - 0.4)
    ok = jnp.isclose(out_train, 0.0, atol=1e-12) | jnp.isclose(out_train, kept, atol=1e-8)
    assert bool(jnp.all(ok)), "training output must be 0 or ref/(1-p) elementwise"

    # eval path (dropout = identity) must equal a plain gather
    out_eval = jax.block_until_ready(
        label_embed_forward(x, weight, dropout_p=0.4, training=False))
    assert jnp.allclose(out_eval, ref, atol=1e-7)

    # renorm path: rows with L2 norm > max_norm get rescaled
    w_big = jax.random.normal(k_w, (n_labels, emb_dim), dtype=jnp.float32) * 2.0
    nrm = jnp.sqrt(jnp.sum(w_big * w_big, axis=-1, keepdims=True))
    w_big_ref = jnp.where(nrm > MAX_NORM, w_big * (MAX_NORM / (nrm + RENORM_EPS)), w_big)
    out_big = jax.block_until_ready(
        label_embed_forward(x, w_big, dropout_p=0.4, training=False))
    assert jnp.allclose(out_big, w_big_ref[x], atol=1e-5, rtol=1e-5)

    print("KERNEL_OK")
</pallas_src>

<mosaic_0001>
module attributes {stable_mosaic.version = 11 : i64} {
  func.func @kernel(%arg0: i32, %arg1: memref<256x1xi32, #tpu.memory_space<vmem>>, %arg2: memref<256x128xi32, #tpu.memory_space<vmem>>, %arg3: memref<128x128xf32, #tpu.memory_space<vmem>>, %arg4: memref<256x128xf32, #tpu.memory_space<vmem>>) attributes {dimension_semantics = [#tpu.dimension_semantics<parallel>], iteration_bounds = array<i64: 1>, scalar_prefetch = 0 : i64, scratch_operands = 0 : i64, tpu.core_type = #tpu.core_type<tc>, window_params = [{transform_indices = @transform_0, window_bounds = array<i64: 256, 1>}, {transform_indices = @transform_1, window_bounds = array<i64: 256, 128>}, {pipeline_mode = #tpu.pipeline_mode<synchronous>, transform_indices = @transform_2, window_bounds = array<i64: 128, 128>}, {transform_indices = @transform_3, window_bounds = array<i64: 256, 128>}]} {
    %c0 = arith.constant 0 : index
    %c0_0 = arith.constant 0 : index
    %0 = vector.load %arg1[%c0, %c0_0] : memref<256x1xi32, #tpu.memory_space<vmem>>, vector<256x1xi32>
    %1 = tpu.iota {dimensions = array<i32: 1>} : vector<256x128xi32>
    %2 = vector.broadcast %0 : vector<256x1xi32> to vector<256x128xi32>
    %3 = arith.cmpi eq, %2, %1 : vector<256x128xi32>
    %4 = arith.extui %3 : vector<256x128xi1> to vector<256x128xi32>
    %5 = arith.sitofp %4 : vector<256x128xi32> to vector<256x128xf32>
    %c0_1 = arith.constant 0 : index
    %c0_2 = arith.constant 0 : index
    %6 = vector.load %arg3[%c0_1, %c0_2] : memref<128x128xf32, #tpu.memory_space<vmem>>, vector<128x128xf32>
    %cst = arith.constant dense<0.000000e+00> : vector<256x128xf32>
    %7 = tpu.matmul %5, %6, %cst {dimension_numbers = #tpu.dot_dimension_numbers<[1], [0], [0], [1], [0, 0, 1, 1], [], []>} : vector<256x128xf32>, vector<128x128xf32>, vector<256x128xf32> -> vector<256x128xf32>
    %c0_3 = arith.constant 0 : index
    %c0_4 = arith.constant 0 : index
    %8 = vector.load %arg2[%c0_3, %c0_4] : memref<256x128xi32, #tpu.memory_space<vmem>>, vector<256x128xi32>
    %c1717986918_i32 = arith.constant 1717986918 : i32
    %9 = vector.broadcast %c1717986918_i32 : i32 to vector<256x128xi32>
    %10 = arith.cmpi uge, %8, %9 : vector<256x128xi32>
    %cst_5 = arith.constant 1.66666663 : f32
    %11 = vector.broadcast %cst_5 : f32 to vector<256x128xf32>
    %12 = arith.mulf %7, %11 : vector<256x128xf32>
    %cst_6 = arith.constant 0.000000e+00 : f32
    %13 = vector.broadcast %cst_6 : f32 to vector<256x128xf32>
    %14 = arith.select %10, %12, %13 : vector<256x128xi1>, vector<256x128xf32>
    %c0_7 = arith.constant 0 : index
    %c0_8 = arith.constant 0 : index
    %15 = vector.load %arg4[%c0_7, %c0_8] : memref<256x128xf32, #tpu.memory_space<vmem>>, vector<256x128xf32>
    tpu.vector_store %arg4[%c0_7, %c0_8], %14 {strides = array<i32>} : memref<256x128xf32, #tpu.memory_space<vmem>>, vector<256x128xf32>,
    return
  }
  func.func @transform_0(%arg0: i32) -> (i32, i32) {
    %c0_i32 = arith.constant 0 : i32
    %c0_i32_0 = arith.constant 0 : i32
    return %arg0, %c0_i32 : i32, i32
  }
  func.func @transform_1(%arg0: i32) -> (i32, i32) {
    %c0_i32 = arith.constant 0 : i32
    %c0_i32_0 = arith.constant 0 : i32
    return %arg0, %c0_i32 : i32, i32
  }
  func.func @transform_2(%arg0: i32) -> (i32, i32) {
    %c0_i32 = arith.constant 0 : i32
    %c0_i32_0 = arith.constant 0 : i32
    %c0_i32_1 = arith.constant 0 : i32
    return %c0_i32, %c0_i32_0 : i32, i32
  }
  func.func @transform_3(%arg0: i32) -> (i32, i32) {
    %c0_i32 = arith.constant 0 : i32
    %c0_i32_0 = arith.constant 0 : i32
    return %arg0, %c0_i32 : i32, i32
  }
}

</mosaic_0001>

<llo_original>
// kernel: tpu_custom_call.1
$region0: #{tpu_custom_call.1}
  #allocation0 [shape = 'u32[]', space=smem, size = 0x4, offset = 0x4, fixed_abs, tag = 'smem constant byte address 0x4 - core index']
  #allocation1 [shape = 'u32[144,128]{1,0:T(1,128)}', space=vmem, size = 0x12000, scoped, tag = 'internal scratch']
  %s0 = inlined_call_operand.vmem [shape: s32[256,1], index: 0, kind: input, shape index: {}]
  %s1 = inlined_call_operand.vmem [shape: u32[256,128], index: 1, kind: input, shape index: {}]
  %s2 = inlined_call_operand.hbm [shape: f32[128,128], index: 2, kind: input, shape index: {}]
  %s3 = inlined_call_operand.hbm [shape: f32[256,128], index: 3, kind: output, shape index: {}]
  %s4 = sld [smem:[#allocation0]]
  $region26: #{tpu_custom_call.1} parent=0
    _
  %s6 = ssub.s32 1, %s4
  %s7 = scalar_select 0, %s6, %s4
  $region1: #{tpu_custom_call.1} parent=0
    #allocation2 [shape = 'u8[65536]{0}', space=vmem, size = 0x10000, scoped, tag = 'input window, operand 2, single buffered']
    #allocation3 [shape = 's32[1]{0}', space=sflag, size = 0x4, scoped, tag = 'scoped memory for tpu_custom_call.1']
    #allocation4 [shape = 's32[1]{0}', space=sflag, size = 0x4, scoped, tag = 'scoped memory for tpu_custom_call.1']
    #allocation5 [shape = 'u8[131072]{0}', space=vmem, size = 0x20000, scoped, tag = 'output window, operand 0, single buffered']
    %8 = vsyncpa [#allocation3], 0
    %9 = vsyncpa [#allocation4], 0
    // Predicated region
    $region2: #{tpu_custom_call.1} parent=1 // pred_check
      _
    $region3: #{tpu_custom_call.1} parent=1 // pred_check_branch
      %11 = sbr.rel (0) target = $region5
    $region4: #{tpu_custom_call.1} parent=1 // pred_region
      _
    $region5: #{tpu_custom_call.1} parent=1 // pred_fallthru
      _
    // Predicated region
    $region6: #{tpu_custom_call.1} parent=1 // pred_check
      _
    $region7: #{tpu_custom_call.1} parent=1 // pred_check_branch
      %13 = sbr.rel (0) target = $region9
    $region8: #{tpu_custom_call.1} parent=1 // pred_region
      _
    $region9: #{tpu_custom_call.1} parent=1 // pred_fallthru
      _
    // Predicated region
    $region10: #{tpu_custom_call.1} parent=1 // pred_check
      _
    $region11: #{tpu_custom_call.1} parent=1 // pred_check_branch
      %15 = sbr.rel (0) target = $region13
    $region12: #{tpu_custom_call.1} parent=1 // pred_region
      %s17 = ssub.s32 2048, 2048
      %18 = vsyncadd [#allocation3], %s17
      %s19 = sshll.u32 [#allocation2], 4
      %s20 = int_to_ptr.vmem [resolvable:$true] %s19
      %25 = dma.hbm_to_vmem [thread:$0]  %s2, 2048, %s20, [#allocation3], 128, 128, 8
    $region13: #{tpu_custom_call.1} parent=1 // pred_fallthru
      _
    // Predicated region
    $region14: #{tpu_custom_call.1} parent=1 // pred_check
      _
    $region15: #{tpu_custom_call.1} parent=1 // pred_check_branch
      %27 = sbr.rel (0) target = $region17
    $region16: #{tpu_custom_call.1} parent=1 // pred_region
      %28 = dma.done [#allocation3], 2048
    $region17: #{tpu_custom_call.1} parent=1 // pred_fallthru
      _
    %v29 = vld [vmem:[%s0] sm:$0xff]
    %v30 = vld [vmem:[%s0 + $0x8] sm:$0xff]
    %v31 = vld [vmem:[%s0 + $0x10] sm:$0xff]
    %v32 = vld [vmem:[%s0 + $0x18] sm:$0xff]
    %v33 = vld [vmem:[%s0 + $0x20] sm:$0xff]
    %v34 = vld [vmem:[%s0 + $0x28] sm:$0xff]
    %v35 = vld [vmem:[%s0 + $0x30] sm:$0xff]
    %v36 = vld [vmem:[%s0 + $0x38] sm:$0xff]
    %v37 = vld [vmem:[%s0 + $0x40] sm:$0xff]
    %v38 = vld [vmem:[%s0 + $0x48] sm:$0xff]
    %v39 = vld [vmem:[%s0 + $0x50] sm:$0xff]
    %v40 = vld [vmem:[%s0 + $0x58] sm:$0xff]
    %v41 = vld [vmem:[%s0 + $0x60] sm:$0xff]
    %v42 = vld [vmem:[%s0 + $0x68] sm:$0xff]
    %v43 = vld [vmem:[%s0 + $0x70] sm:$0xff]
    %v44 = vld [vmem:[%s0 + $0x78] sm:$0xff]
    %v45 = vld [vmem:[%s0 + $0x80] sm:$0xff]
    %v46 = vld [vmem:[%s0 + $0x88] sm:$0xff]
    %v47 = vld [vmem:[%s0 + $0x90] sm:$0xff]
    %v48 = vld [vmem:[%s0 + $0x98] sm:$0xff]
    %v49 = vld [vmem:[%s0 + $0xa0] sm:$0xff]
    %v50 = vld [vmem:[%s0 + $0xa8] sm:$0xff]
    %v51 = vld [vmem:[%s0 + $0xb0] sm:$0xff]
    %v52 = vld [vmem:[%s0 + $0xb8] sm:$0xff]
    %v53 = vld [vmem:[%s0 + $0xc0] sm:$0xff]
    %v54 = vld [vmem:[%s0 + $0xc8] sm:$0xff]
    %v55 = vld [vmem:[%s0 + $0xd0] sm:$0xff]
    %v56 = vld [vmem:[%s0 + $0xd8] sm:$0xff]
    %v57 = vld [vmem:[%s0 + $0xe0] sm:$0xff]
    %v58 = vld [vmem:[%s0 + $0xe8] sm:$0xff]
    %v59 = vld [vmem:[%s0 + $0xf0] sm:$0xff]
    %v60 = vld [vmem:[%s0 + $0xf8] sm:$0xff]
    %v61 = vlaneseq
    %v62 = vand.u32 %v61, 127
    %63 = vset.pattern.permute.xlu0 0
    %64 = vperm.xlu0 %63, %v29
    %v65 = vpop.permute.xlu0 %64
    %66 = vset.pattern.permute.xlu0 0
    %67 = vperm.xlu0 %66, %v30
    %v68 = vpop.permute.xlu0 %67
    %69 = vset.pattern.permute.xlu0 0
    %70 = vperm.xlu0 %69, %v31
    %v71 = vpop.permute.xlu0 %70
    %72 = vset.pattern.permute.xlu0 0
    %73 = vperm.xlu0 %72, %v32
    %v74 = vpop.permute.xlu0 %73
    %75 = vset.pattern.permute.xlu0 0
    %76 = vperm.xlu0 %75, %v33
    %v77 = vpop.permute.xlu0 %76
    %78 = vset.pattern.permute.xlu0 0
    %79 = vperm.xlu0 %78, %v34
    %v80 = vpop.permute.xlu0 %79
    %81 = vset.pattern.permute.xlu0 0
    %82 = vperm.xlu0 %81, %v35
    %v83 = vpop.permute.xlu0 %82
    %84 = vset.pattern.permute.xlu0 0
    %85 = vperm.xlu0 %84, %v36
    %v86 = vpop.permute.xlu0 %85
    %87 = vset.pattern.permute.xlu0 0
    %88 = vperm.xlu0 %87, %v37
    %v89 = vpop.permute.xlu0 %88
    %90 = vset.pattern.permute.xlu0 0
    %91 = vperm.xlu0 %90, %v38
    %v92 = vpop.permute.xlu0 %91
    %93 = vset.pattern.permute.xlu0 0
    %94 = vperm.xlu0 %93, %v39
    %v95 = vpop.permute.xlu0 %94
    %96 = vset.pattern.permute.xlu0 0
    %97 = vperm.xlu0 %96, %v40
    %v98 = vpop.permute.xlu0 %97
    %99 = vset.pattern.permute.xlu0 0
    %100 = vperm.xlu0 %99, %v41
    %v101 = vpop.permute.xlu0 %100
    %102 = vset.pattern.permute.xlu0 0
    %103 = vperm.xlu0 %102, %v42
    %v104 = vpop.permute.xlu0 %103
    %105 = vset.pattern.permute.xlu0 0
    %106 = vperm.xlu0 %105, %v43
    %v107 = vpop.permute.xlu0 %106
    %108 = vset.pattern.permute.xlu0 0
    %109 = vperm.xlu0 %108, %v44
    %v110 = vpop.permute.xlu0 %109
    %111 = vset.pattern.permute.xlu0 0
    %112 = vperm.xlu0 %111, %v45
    %v113 = vpop.permute.xlu0 %112
    %114 = vset.pattern.permute.xlu0 0
    %115 = vperm.xlu0 %114, %v46
    %v116 = vpop.permute.xlu0 %115
    %117 = vset.pattern.permute.xlu0 0
    %118 = vperm.xlu0 %117, %v47
    %v119 = vpop.permute.xlu0 %118
    %120 = vset.pattern.permute.xlu0 0
    %121 = vperm.xlu0 %120, %v48
    %v122 = vpop.permute.xlu0 %121
    %123 = vset.pattern.permute.xlu0 0
    %124 = vperm.xlu0 %123, %v49
    %v125 = vpop.permute.xlu0 %124
    %126 = vset.pattern.permute.xlu0 0
    %127 = vperm.xlu0 %126, %v50
    %v128 = vpop.permute.xlu0 %127
    %129 = vset.pattern.permute.xlu0 0
    %130 = vperm.xlu0 %129, %v51
    %v131 = vpop.permute.xlu0 %130
    %132 = vset.pattern.permute.xlu0 0
    %133 = vperm.xlu0 %132, %v52
    %v134 = vpop.permute.xlu0 %133
    %135 = vset.pattern.permute.xlu0 0
    %136 = vperm.xlu0 %135, %v53
    %v137 = vpop.permute.xlu0 %136
    %138 = vset.pattern.permute.xlu0 0
    %139 = vperm.xlu0 %138, %v54
    %v140 = vpop.permute.xlu0 %139
    %141 = vset.pattern.permute.xlu0 0
    %142 = vperm.xlu0 %141, %v55
    %v143 = vpop.permute.xlu0 %142
    %144 = vset.pattern.permute.xlu0 0
    %145 = vperm.xlu0 %144, %v56
    %v146 = vpop.permute.xlu0 %145
    %147 = vset.pattern.permute.xlu0 0
    %148 = vperm.xlu0 %147, %v57
    %v149 = vpop.permute.xlu0 %148
    %150 = vset.pattern.permute.xlu0 0
    %151 = vperm.xlu0 %150, %v58
    %v152 = vpop.permute.xlu0 %151
    %153 = vset.pattern.permute.xlu0 0
    %154 = vperm.xlu0 %153, %v59
    %v155 = vpop.permute.xlu0 %154
    %156 = vset.pattern.permute.xlu0 0
    %157 = vperm.xlu0 %156, %v60
    %v158 = vpop.permute.xlu0 %157
    %vm159 = vcmp.eq.s32.totalorder %v65, %v62
    %vm160 = vcmp.eq.s32.totalorder %v68, %v62
    %vm161 = vcmp.eq.s32.totalorder %v71, %v62
    %vm162 = vcmp.eq.s32.totalorder %v74, %v62
    %vm163 = vcmp.eq.s32.totalorder %v77, %v62
    %vm164 = vcmp.eq.s32.totalorder %v80, %v62
    %vm165 = vcmp.eq.s32.totalorder %v83, %v62
    %vm166 = vcmp.eq.s32.totalorder %v86, %v62
    %vm167 = vcmp.eq.s32.totalorder %v89, %v62
    %vm168 = vcmp.eq.s32.totalorder %v92, %v62
    %vm169 = vcmp.eq.s32.totalorder %v95, %v62
    %vm170 = vcmp.eq.s32.totalorder %v98, %v62
    %vm171 = vcmp.eq.s32.totalorder %v101, %v62
    %vm172 = vcmp.eq.s32.totalorder %v104, %v62
    %vm173 = vcmp.eq.s32.totalorder %v107, %v62
    %vm174 = vcmp.eq.s32.totalorder %v110, %v62
    %vm175 = vcmp.eq.s32.totalorder %v113, %v62
    %vm176 = vcmp.eq.s32.totalorder %v116, %v62
    %vm177 = vcmp.eq.s32.totalorder %v119, %v62
    %vm178 = vcmp.eq.s32.totalorder %v122, %v62
    %vm179 = vcmp.eq.s32.totalorder %v125, %v62
    %vm180 = vcmp.eq.s32.totalorder %v128, %v62
    %vm181 = vcmp.eq.s32.totalorder %v131, %v62
    %vm182 = vcmp.eq.s32.totalorder %v134, %v62
    %vm183 = vcmp.eq.s32.totalorder %v137, %v62
    %vm184 = vcmp.eq.s32.totalorder %v140, %v62
    %vm185 = vcmp.eq.s32.totalorder %v143, %v62
    %vm186 = vcmp.eq.s32.totalorder %v146, %v62
    %vm187 = vcmp.eq.s32.totalorder %v149, %v62
    %vm188 = vcmp.eq.s32.totalorder %v152, %v62
    %vm189 = vcmp.eq.s32.totalorder %v155, %v62
    %vm190 = vcmp.eq.s32.totalorder %v158, %v62
    %v191 = vsel %vm159, 1, 0
    %v192 = vsel %vm160, 1, 0
    %v193 = vsel %vm161, 1, 0
    %v194 = vsel %vm162, 1, 0
    %v195 = vsel %vm163, 1, 0
    %v196 = vsel %vm164, 1, 0
    %v197 = vsel %vm165, 1, 0
    %v198 = vsel %vm166, 1, 0
    %v199 = vsel %vm167, 1, 0
    %v200 = vsel %vm168, 1, 0
    %v201 = vsel %vm169, 1, 0
    %v202 = vsel %vm170, 1, 0
    %v203 = vsel %vm171, 1, 0
    %v204 = vsel %vm172, 1, 0
    %v205 = vsel %vm173, 1, 0
    %v206 = vsel %vm174, 1, 0
    %v207 = vsel %vm175, 1, 0
    %v208 = vsel %vm176, 1, 0
    %v209 = vsel %vm177, 1, 0
    %v210 = vsel %vm178, 1, 0
    %v211 = vsel %vm179, 1, 0
    %v212 = vsel %vm180, 1, 0
    %v213 = vsel %vm181, 1, 0
    %v214 = vsel %vm182, 1, 0
    %v215 = vsel %vm183, 1, 0
    %v216 = vsel %vm184, 1, 0
    %v217 = vsel %vm185, 1, 0
    %v218 = vsel %vm186, 1, 0
    %v219 = vsel %vm187, 1, 0
    %v220 = vsel %vm188, 1, 0
    %v221 = vsel %vm189, 1, 0
    %v222 = vsel %vm190, 1, 0
    %v223 = vcvt.s32.f32 %v191
    %v224 = vcvt.s32.f32 %v192
    %v225 = vcvt.s32.f32 %v193
    %v226 = vcvt.s32.f32 %v194
    %v227 = vcvt.s32.f32 %v195
    %v228 = vcvt.s32.f32 %v196
    %v229 = vcvt.s32.f32 %v197
    %v230 = vcvt.s32.f32 %v198
    %v231 = vcvt.s32.f32 %v199
    %v232 = vcvt.s32.f32 %v200
    %v233 = vcvt.s32.f32 %v201
    %v234 = vcvt.s32.f32 %v202
    %v235 = vcvt.s32.f32 %v203
    %v236 = vcvt.s32.f32 %v204
    %v237 = vcvt.s32.f32 %v205
    %v238 = vcvt.s32.f32 %v206
    %v239 = vcvt.s32.f32 %v207
    %v240 = vcvt.s32.f32 %v208
    %v241 = vcvt.s32.f32 %v209
    %v242 = vcvt.s32.f32 %v210
    %v243 = vcvt.s32.f32 %v211
    %v244 = vcvt.s32.f32 %v212
    %v245 = vcvt.s32.f32 %v213
    %v246 = vcvt.s32.f32 %v214
    %v247 = vcvt.s32.f32 %v215
    %v248 = vcvt.s32.f32 %v216
    %v249 = vcvt.s32.f32 %v217
    %v250 = vcvt.s32.f32 %v218
    %v251 = vcvt.s32.f32 %v219
    %v252 = vcvt.s32.f32 %v220
    %v253 = vcvt.s32.f32 %v221
    %v254 = vcvt.s32.f32 %v222
    %v255 = vld [vmem:[#allocation2] sm:$0xff]
    %v256 = vld [vmem:[#allocation2 + $0x8] sm:$0xff]
    %v257 = vld [vmem:[#allocation2 + $0x10] sm:$0xff]
    %v258 = vld [vmem:[#allocation2 + $0x18] sm:$0xff]
    %v259 = vld [vmem:[#allocation2 + $0x20] sm:$0xff]
    %v260 = vld [vmem:[#allocation2 + $0x28] sm:$0xff]
    %v261 = vld [vmem:[#allocation2 + $0x30] sm:$0xff]
    %v262 = vld [vmem:[#allocation2 + $0x38] sm:$0xff]
    %v263 = vld [vmem:[#allocation2 + $0x40] sm:$0xff]
    %v264 = vld [vmem:[#allocation2 + $0x48] sm:$0xff]
    %v265 = vld [vmem:[#allocation2 + $0x50] sm:$0xff]
    %v266 = vld [vmem:[#allocation2 + $0x58] sm:$0xff]
    %v267 = vld [vmem:[#allocation2 + $0x60] sm:$0xff]
    %v268 = vld [vmem:[#allocation2 + $0x68] sm:$0xff]
    %v269 = vld [vmem:[#allocation2 + $0x70] sm:$0xff]
    %v270 = vld [vmem:[#allocation2 + $0x78] sm:$0xff]
    %271 = vmatprep.subr.mxu0 0.0
    %272 = vmatpush1.msra.mxu0 %v255
    %273 = vmatprep.subr.mxu0 0.0
    %274 = vmatpush1.msra.mxu0 %v256
    %275 = vmatprep.subr.mxu0 0.0
    %276 = vmatpush1.msra.mxu0 %v257
    %277 = vmatprep.subr.mxu0 0.0
    %278 = vmatpush1.msra.mxu0 %v258
    %279 = vmatprep.subr.mxu0 0.0
    %280 = vmatpush1.msra.mxu0 %v259
    %281 = vmatprep.subr.mxu0 0.0
    %282 = vmatpush1.msra.mxu0 %v260
    %283 = vmatprep.subr.mxu0 0.0
    %284 = vmatpush1.msra.mxu0 %v261
    %285 = vmatprep.subr.mxu0 0.0
    %286 = vmatpush1.msra.mxu0 %v262
    %287 = vmatprep.subr.mxu0 0.0
    %288 = vmatpush1.msra.mxu0 %v263
    %289 = vmatprep.subr.mxu0 0.0
    %290 = vmatpush1.msra.mxu0 %v264
    %291 = vmatprep.subr.mxu0 0.0
    %292 = vmatpush1.msra.mxu0 %v265
    %293 = vmatprep.subr.mxu0 0.0
    %294 = vmatpush1.msra.mxu0 %v266
    %295 = vmatprep.subr.mxu0 0.0
    %296 = vmatpush1.msra.mxu0 %v267
    %297 = vmatprep.subr.mxu0 0.0
    %298 = vmatpush1.msra.mxu0 %v268
    %299 = vmatprep.subr.mxu0 0.0
    %300 = vmatpush1.msra.mxu0 %v269
    %301 = vmatprep.subr.mxu0 0.0
    %302 = vmatpush1.msra.mxu0 %v270
    %303 = vmatprep.subr.mxu0 0.0
    %304 = vmatpush1.msra.mxu0 0.0
    %305 = vmatprep.subr.mxu0 0.0
    %306 = vmatpush1.msra.mxu0 0.0
    %307 = vmatprep.subr.mxu0 0.0
    %308 = vmatpush1.msra.mxu0 0.0
    %309 = vmatprep.subr.mxu0 0.0
    %310 = vmatpush1.msra.mxu0 0.0
    %311 = vmatprep.subr.mxu0 0.0
    %312 = vmatpush1.msra.mxu0 0.0
    %313 = vmatprep.subr.mxu0 0.0
    %314 = vmatpush1.msra.mxu0 0.0
    %315 = vmatprep.subr.mxu0 0.0
    %316 = vmatpush1.msra.mxu0 0.0
    %317 = vmatprep.subr.mxu0 0.0
    %318 = vmatpush1.msra.mxu0 0.0
    %319 = vmatprep.subr.mxu0 0.0
    %320 = vmatpush1.msra.mxu0 0.0
    %321 = vmatprep.subr.mxu0 0.0
    %322 = vmatpush1.msra.mxu0 0.0
    %323 = vmatprep.subr.mxu0 0.0
    %324 = vmatpush1.msra.mxu0 0.0
    %325 = vmatprep.subr.mxu0 0.0
    %326 = vmatpush1.msra.mxu0 0.0
    %327 = vmatprep.subr.mxu0 0.0
    %328 = vmatpush1.msra.mxu0 0.0
    %329 = vmatprep.subr.mxu0 0.0
    %330 = vmatpush1.msra.mxu0 0.0
    %331 = vmatprep.subr.mxu0 0.0
    %332 = vmatpush1.msra.mxu0 0.0
    %333 = vmatprep.subr.mxu0 0.0
    %334 = vmatpush1.msra.mxu0 0.0
    %335 = vmatprep.mubr.f32.mxu0 0.0
    %336 = vmatmul.mubr.f32.gmra.mrb[0].mxu0 %v223
    %v337 = vpop.f32.mrb[0].mxu0
    %v338 = vadd.f32 0.0, %v337
    %v339 = vpop.f32.mrb[0].mxu0
    %340 = vmatprep.mubr.f32.mxu0 0.0
    %341 = vmatmul.mubr.f32.gmra.mrb[0].mxu0 %v224
    %v342 = vpop.f32.mrb[0].mxu0
    %v343 = vadd.f32 0.0, %v342
    %v344 = vpop.f32.mrb[0].mxu0
    %345 = vmatprep.mubr.f32.mxu0 0.0
    %346 = vmatmul.mubr.f32.gmra.mrb[0].mxu0 %v225
    %v347 = vpop.f32.mrb[0].mxu0
    %v348 = vadd.f32 0.0, %v347
    %v349 = vpop.f32.mrb[0].mxu0
    %350 = vmatprep.mubr.f32.mxu0 0.0
    %351 = vmatmul.mubr.f32.gmra.mrb[0].mxu0 %v226
    %v352 = vpop.f32.mrb[0].mxu0
    %v353 = vadd.f32 0.0, %v352
    %v354 = vpop.f32.mrb[0].mxu0
    %355 = vmatprep.mubr.f32.mxu0 0.0
    %356 = vmatmul.mubr.f32.gmra.mrb[0].mxu0 %v227
    %v357 = vpop.f32.mrb[0].mxu0
    %v358 = vadd.f32 0.0, %v357
    %v359 = vpop.f32.mrb[0].mxu0
    %360 = vmatprep.mubr.f32.mxu0 0.0
    %361 = vmatmul.mubr.f32.gmra.mrb[0].mxu0 %v228
    %v362 = vpop.f32.mrb[0].mxu0
    %v363 = vadd.f32 0.0, %v362
    %v364 = vpop.f32.mrb[0].mxu0
    %365 = vmatprep.mubr.f32.mxu0 0.0
    %366 = vmatmul.mubr.f32.gmra.mrb[0].mxu0 %v229
    %v367 = vpop.f32.mrb[0].mxu0
    %v368 = vadd.f32 0.0, %v367
    %v369 = vpop.f32.mrb[0].mxu0
    %370 = vmatprep.mubr.f32.mxu0 0.0
    %371 = vmatmul.mubr.f32.gmra.mrb[0].mxu0 %v230
    %v372 = vpop.f32.mrb[0].mxu0
    %v373 = vadd.f32 0.0, %v372
    %v374 = vpop.f32.mrb[0].mxu0
    %375 = vmatprep.mubr.f32.mxu0 0.0
    %376 = vmatmul.mubr.f32.gmra.mrb[0].mxu0 %v231
    %v377 = vpop.f32.mrb[0].mxu0
    %v378 = vadd.f32 0.0, %v377
    %v379 = vpop.f32.mrb[0].mxu0
    %380 = vmatprep.mubr.f32.mxu0 0.0
    %381 = vmatmul.mubr.f32.gmra.mrb[0].mxu0 %v232
    %v382 = vpop.f32.mrb[0].mxu0
    %v383 = vadd.f32 0.0, %v382
    %v384 = vpop.f32.mrb[0].mxu0
    %385 = vmatprep.mubr.f32.mxu0 0.0
    %386 = vmatmul.mubr.f32.gmra.mrb[0].mxu0 %v233
    %v387 = vpop.f32.mrb[0].mxu0
    %v388 = vadd.f32 0.0, %v387
    %v389 = vpop.f32.mrb[0].mxu0
    %390 = vmatprep.mubr.f32.mxu0 0.0
    %391 = vmatmul.mubr.f32.gmra.mrb[0].mxu0 %v234
    %v392 = vpop.f32.mrb[0].mxu0
    %v393 = vadd.f32 0.0, %v392
    %v394 = vpop.f32.mrb[0].mxu0
    %395 = vmatprep.mubr.f32.mxu0 0.0
    %396 = vmatmul.mubr.f32.gmra.mrb[0].mxu0 %v235
    %v397 = vpop.f32.mrb[0].mxu0
    %v398 = vadd.f32 0.0, %v397
    %v399 = vpop.f32.mrb[0].mxu0
    %400 = vmatprep.mubr.f32.mxu0 0.0
    %401 = vmatmul.mubr.f32.gmra.mrb[0].mxu0 %v236
    %v402 = vpop.f32.mrb[0].mxu0
    %v403 = vadd.f32 0.0, %v402
    %v404 = vpop.f32.mrb[0].mxu0
    %405 = vmatprep.mubr.f32.mxu0 0.0
    %406 = vmatmul.mubr.f32.gmra.mrb[0].mxu0 %v237
    %v407 = vpop.f32.mrb[0].mxu0
    %v408 = vadd.f32 0.0, %v407
    %v409 = vpop.f32.mrb[0].mxu0
    %410 = vmatprep.mubr.f32.mxu0 0.0
    %411 = vmatmul.mubr.f32.gmra.mrb[0].mxu0 %v238
    %v412 = vpop.f32.mrb[0].mxu0
    %v413 = vadd.f32 0.0, %v412
    %v414 = vpop.f32.mrb[0].mxu0
    %415 = vmatprep.mubr.f32.mxu0 0.0
    %416 = vmatmul.mubr.f32.gmra.mrb[0].mxu0 %v239
    %v417 = vpop.f32.mrb[0].mxu0
    %v418 = vadd.f32 0.0, %v417
    %v419 = vpop.f32.mrb[0].mxu0
    %420 = vmatprep.mubr.f32.mxu0 0.0
    %421 = vmatmul.mubr.f32.gmra.mrb[0].mxu0 %v240
    %v422 = vpop.f32.mrb[0].mxu0
    %v423 = vadd.f32 0.0, %v422
    %v424 = vpop.f32.mrb[0].mxu0
    %425 = vmatprep.mubr.f32.mxu0 0.0
    %426 = vmatmul.mubr.f32.gmra.mrb[0].mxu0 %v241
    %v427 = vpop.f32.mrb[0].mxu0
    %v428 = vadd.f32 0.0, %v427
    %v429 = vpop.f32.mrb[0].mxu0
    %430 = vmatprep.mubr.f32.mxu0 0.0
    %431 = vmatmul.mubr.f32.gmra.mrb[0].mxu0 %v242
    %v432 = vpop.f32.mrb[0].mxu0
    %v433 = vadd.f32 0.0, %v432
    %v434 = vpop.f32.mrb[0].mxu0
    %435 = vmatprep.mubr.f32.mxu0 0.0
    %436 = vmatmul.mubr.f32.gmra.mrb[0].mxu0 %v243
    %v437 = vpop.f32.mrb[0].mxu0
    %v438 = vadd.f32 0.0, %v437
    %v439 = vpop.f32.mrb[0].mxu0
    %440 = vmatprep.mubr.f32.mxu0 0.0
    %441 = vmatmul.mubr.f32.gmra.mrb[0].mxu0 %v244
    %v442 = vpop.f32.mrb[0].mxu0
    %v443 = vadd.f32 0.0, %v442
    %v444 = vpop.f32.mrb[0].mxu0
    %445 = vmatprep.mubr.f32.mxu0 0.0
    %446 = vmatmul.mubr.f32.gmra.mrb[0].mxu0 %v245
    %v447 = vpop.f32.mrb[0].mxu0
    %v448 = vadd.f32 0.0, %v447
    %v449 = vpop.f32.mrb[0].mxu0
    %450 = vmatprep.mubr.f32.mxu0 0.0
    %451 = vmatmul.mubr.f32.gmra.mrb[0].mxu0 %v246
    %v452 = vpop.f32.mrb[0].mxu0
    %v453 = vadd.f32 0.0, %v452
    %v454 = vpop.f32.mrb[0].mxu0
    %455 = vmatprep.mubr.f32.mxu0 0.0
    %456 = vmatmul.mubr.f32.gmra.mrb[0].mxu0 %v247
    %v457 = vpop.f32.mrb[0].mxu0
    %v458 = vadd.f32 0.0, %v457
    %v459 = vpop.f32.mrb[0].mxu0
    %460 = vmatprep.mubr.f32.mxu0 0.0
    %461 = vmatmul.mubr.f32.gmra.mrb[0].mxu0 %v248
    %v462 = vpop.f32.mrb[0].mxu0
    %v463 = vadd.f32 0.0, %v462
    %v464 = vpop.f32.mrb[0].mxu0
    %465 = vmatprep.mubr.f32.mxu0 0.0
    %466 = vmatmul.mubr.f32.gmra.mrb[0].mxu0 %v249
    %v467 = vpop.f32.mrb[0].mxu0
    %v468 = vadd.f32 0.0, %v467
    %v469 = vpop.f32.mrb[0].mxu0
    %470 = vmatprep.mubr.f32.mxu0 0.0
    %471 = vmatmul.mubr.f32.gmra.mrb[0].mxu0 %v250
    %v472 = vpop.f32.mrb[0].mxu0
    %v473 = vadd.f32 0.0, %v472
    %v474 = vpop.f32.mrb[0].mxu0
    %475 = vmatprep.mubr.f32.mxu0 0.0
    %476 = vmatmul.mubr.f32.gmra.mrb[0].mxu0 %v251
    %v477 = vpop.f32.mrb[0].mxu0
    %v478 = vadd.f32 0.0, %v477
    %v479 = vpop.f32.mrb[0].mxu0
    %480 = vmatprep.mubr.f32.mxu0 0.0
    %481 = vmatmul.mubr.f32.gmra.mrb[0].mxu0 %v252
    %v482 = vpop.f32.mrb[0].mxu0
    %v483 = vadd.f32 0.0, %v482
    %v484 = vpop.f32.mrb[0].mxu0
    %485 = vmatprep.mubr.f32.mxu0 0.0
    %486 = vmatmul.mubr.f32.gmra.mrb[0].mxu0 %v253
    %v487 = vpop.f32.mrb[0].mxu0
    %v488 = vadd.f32 0.0, %v487
    %v489 = vpop.f32.mrb[0].mxu0
    %490 = vmatprep.mubr.f32.mxu0 0.0
    %491 = vmatmul.mubr.f32.gmra.mrb[0].mxu0 %v254
    %v492 = vpop.f32.mrb[0].mxu0
    %v493 = vadd.f32 0.0, %v492
    %v494 = vpop.f32.mrb[0].mxu0
    %495 = vdwg.mxu0
    %v496 = vld [vmem:[%s1] sm:$0xff]
    %v497 = vld [vmem:[%s1 + $0x8] sm:$0xff]
    %v498 = vld [vmem:[%s1 + $0x10] sm:$0xff]
    %v499 = vld [vmem:[%s1 + $0x18] sm:$0xff]
    %v500 = vld [vmem:[%s1 + $0x20] sm:$0xff]
    %v501 = vld [vmem:[%s1 + $0x28] sm:$0xff]
    %v502 = vld [vmem:[%s1 + $0x30] sm:$0xff]
    %v503 = vld [vmem:[%s1 + $0x38] sm:$0xff]
    %v504 = vld [vmem:[%s1 + $0x40] sm:$0xff]
    %v505 = vld [vmem:[%s1 + $0x48] sm:$0xff]
    %v506 = vld [vmem:[%s1 + $0x50] sm:$0xff]
    %v507 = vld [vmem:[%s1 + $0x58] sm:$0xff]
    %v508 = vld [vmem:[%s1 + $0x60] sm:$0xff]
    %v509 = vld [vmem:[%s1 + $0x68] sm:$0xff]
    %v510 = vld [vmem:[%s1 + $0x70] sm:$0xff]
    %v511 = vld [vmem:[%s1 + $0x78] sm:$0xff]
    %v512 = vld [vmem:[%s1 + $0x80] sm:$0xff]
    %v513 = vld [vmem:[%s1 + $0x88] sm:$0xff]
    %v514 = vld [vmem:[%s1 + $0x90] sm:$0xff]
    %v515 = vld [vmem:[%s1 + $0x98] sm:$0xff]
    %v516 = vld [vmem:[%s1 + $0xa0] sm:$0xff]
    %v517 = vld [vmem:[%s1 + $0xa8] sm:$0xff]
    %v518 = vld [vmem:[%s1 + $0xb0] sm:$0xff]
    %v519 = vld [vmem:[%s1 + $0xb8] sm:$0xff]
    %v520 = vld [vmem:[%s1 + $0xc0] sm:$0xff]
    %v521 = vld [vmem:[%s1 + $0xc8] sm:$0xff]
    %v522 = vld [vmem:[%s1 + $0xd0] sm:$0xff]
    %v523 = vld [vmem:[%s1 + $0xd8] sm:$0xff]
    %v524 = vld [vmem:[%s1 + $0xe0] sm:$0xff]
    %v525 = vld [vmem:[%s1 + $0xe8] sm:$0xff]
    %v526 = vld [vmem:[%s1 + $0xf0] sm:$0xff]
    %v527 = vld [vmem:[%s1 + $0xf8] sm:$0xff]
    %vm528 = vcmp.ge.u32.totalorder %v496, 1717986918
    %vm529 = vcmp.ge.u32.totalorder %v497, 1717986918
    %vm530 = vcmp.ge.u32.totalorder %v498, 1717986918
    %vm531 = vcmp.ge.u32.totalorder %v499, 1717986918
    %vm532 = vcmp.ge.u32.totalorder %v500, 1717986918
    %vm533 = vcmp.ge.u32.totalorder %v501, 1717986918
    %vm534 = vcmp.ge.u32.totalorder %v502, 1717986918
    %vm535 = vcmp.ge.u32.totalorder %v503, 1717986918
    %vm536 = vcmp.ge.u32.totalorder %v504, 1717986918
    %vm537 = vcmp.ge.u32.totalorder %v505, 1717986918
    %vm538 = vcmp.ge.u32.totalorder %v506, 1717986918
    %vm539 = vcmp.ge.u32.totalorder %v507, 1717986918
    %vm540 = vcmp.ge.u32.totalorder %v508, 1717986918
    %vm541 = vcmp.ge.u32.totalorder %v509, 1717986918
    %vm542 = vcmp.ge.u32.totalorder %v510, 1717986918
    %vm543 = vcmp.ge.u32.totalorder %v511, 1717986918
    %vm544 = vcmp.ge.u32.totalorder %v512, 1717986918
    %vm545 = vcmp.ge.u32.totalorder %v513, 1717986918
    %vm546 = vcmp.ge.u32.totalorder %v514, 1717986918
    %vm547 = vcmp.ge.u32.totalorder %v515, 1717986918
    %vm548 = vcmp.ge.u32.totalorder %v516, 1717986918
    %vm549 = vcmp.ge.u32.totalorder %v517, 1717986918
    %vm550 = vcmp.ge.u32.totalorder %v518, 1717986918
    %vm551 = vcmp.ge.u32.totalorder %v519, 1717986918
    %vm552 = vcmp.ge.u32.totalorder %v520, 1717986918
    %vm553 = vcmp.ge.u32.totalorder %v521, 1717986918
    %vm554 = vcmp.ge.u32.totalorder %v522, 1717986918
    %vm555 = vcmp.ge.u32.totalorder %v523, 1717986918
    %vm556 = vcmp.ge.u32.totalorder %v524, 1717986918
    %vm557 = vcmp.ge.u32.totalorder %v525, 1717986918
    %vm558 = vcmp.ge.u32.totalorder %v526, 1717986918
    %vm559 = vcmp.ge.u32.totalorder %v527, 1717986918
    %v560 = vmul.f32 %v338, 1.6666666
    %v561 = vmul.f32 %v343, 1.6666666
    %v562 = vmul.f32 %v348, 1.6666666
    %v563 = vmul.f32 %v353, 1.6666666
    %v564 = vmul.f32 %v358, 1.6666666
    %v565 = vmul.f32 %v363, 1.6666666
    %v566 = vmul.f32 %v368, 1.6666666
    %v567 = vmul.f32 %v373, 1.6666666
    %v568 = vmul.f32 %v378, 1.6666666
    %v569 = vmul.f32 %v383, 1.6666666
    %v570 = vmul.f32 %v388, 1.6666666
    %v571 = vmul.f32 %v393, 1.6666666
    %v572 = vmul.f32 %v398, 1.6666666
    %v573 = vmul.f32 %v403, 1.6666666
    %v574 = vmul.f32 %v408, 1.6666666
    %v575 = vmul.f32 %v413, 1.6666666
    %v576 = vmul.f32 %v418, 1.6666666
    %v577 = vmul.f32 %v423, 1.6666666
    %v578 = vmul.f32 %v428, 1.6666666
    %v579 = vmul.f32 %v433, 1.6666666
    %v580 = vmul.f32 %v438, 1.6666666
    %v581 = vmul.f32 %v443, 1.6666666
    %v582 = vmul.f32 %v448, 1.6666666
    %v583 = vmul.f32 %v453, 1.6666666
    %v584 = vmul.f32 %v458, 1.6666666
    %v585 = vmul.f32 %v463, 1.6666666
    %v586 = vmul.f32 %v468, 1.6666666
    %v587 = vmul.f32 %v473, 1.6666666
    %v588 = vmul.f32 %v478, 1.6666666
    %v589 = vmul.f32 %v483, 1.6666666
    %v590 = vmul.f32 %v488, 1.6666666
    %v591 = vmul.f32 %v493, 1.6666666
    %v592 = vsel %vm528, %v560, 0.0
    %v593 = vsel %vm529, %v561, 0.0
    %v594 = vsel %vm530, %v562, 0.0
    %v595 = vsel %vm531, %v563, 0.0
    %v596 = vsel %vm532, %v564, 0.0
    %v597 = vsel %vm533, %v565, 0.0
    %v598 = vsel %vm534, %v566, 0.0
    %v599 = vsel %vm535, %v567, 0.0
    %v600 = vsel %vm536, %v568, 0.0
    %v601 = vsel %vm537, %v569, 0.0
    %v602 = vsel %vm538, %v570, 0.0
    %v603 = vsel %vm539, %v571, 0.0
    %v604 = vsel %vm540, %v572, 0.0
    %v605 = vsel %vm541, %v573, 0.0
    %v606 = vsel %vm542, %v574, 0.0
    %v607 = vsel %vm543, %v575, 0.0
    %v608 = vsel %vm544, %v576, 0.0
    %v609 = vsel %vm545, %v577, 0.0
    %v610 = vsel %vm546, %v578, 0.0
    %v611 = vsel %vm547, %v579, 0.0
    %v612 = vsel %vm548, %v580, 0.0
    %v613 = vsel %vm549, %v581, 0.0
    %v614 = vsel %vm550, %v582, 0.0
    %v615 = vsel %vm551, %v583, 0.0
    %v616 = vsel %vm552, %v584, 0.0
    %v617 = vsel %vm553, %v585, 0.0
    %v618 = vsel %vm554, %v586, 0.0
    %v619 = vsel %vm555, %v587, 0.0
    %v620 = vsel %vm556, %v588, 0.0
    %v621 = vsel %vm557, %v589, 0.0
    %v622 = vsel %vm558, %v590, 0.0
    %v623 = vsel %vm559, %v591, 0.0
    %624 = vst [vmem:[#allocation5] sm:$0xff] %v592
    %625 = vst [vmem:[#allocation5 + $0x8] sm:$0xff] %v593
    %626 = vst [vmem:[#allocation5 + $0x10] sm:$0xff] %v594
    %627 = vst [vmem:[#allocation5 + $0x18] sm:$0xff] %v595
    %628 = vst [vmem:[#allocation5 + $0x20] sm:$0xff] %v596
    %629 = vst [vmem:[#allocation5 + $0x28] sm:$0xff] %v597
    %630 = vst [vmem:[#allocation5 + $0x30] sm:$0xff] %v598
    %631 = vst [vmem:[#allocation5 + $0x38] sm:$0xff] %v599
    %632 = vst [vmem:[#allocation5 + $0x40] sm:$0xff] %v600
    %633 = vst [vmem:[#allocation5 + $0x48] sm:$0xff] %v601
    %634 = vst [vmem:[#allocation5 + $0x50] sm:$0xff] %v602
    %635 = vst [vmem:[#allocation5 + $0x58] sm:$0xff] %v603
    %636 = vst [vmem:[#allocation5 + $0x60] sm:$0xff] %v604
    %637 = vst [vmem:[#allocation5 + $0x68] sm:$0xff] %v605
    %638 = vst [vmem:[#allocation5 + $0x70] sm:$0xff] %v606
    %639 = vst [vmem:[#allocation5 + $0x78] sm:$0xff] %v607
    %640 = vst [vmem:[#allocation5 + $0x80] sm:$0xff] %v608
    %641 = vst [vmem:[#allocation5 + $0x88] sm:$0xff] %v609
    %642 = vst [vmem:[#allocation5 + $0x90] sm:$0xff] %v610
    %643 = vst [vmem:[#allocation5 + $0x98] sm:$0xff] %v611
    %644 = vst [vmem:[#allocation5 + $0xa0] sm:$0xff] %v612
    %645 = vst [vmem:[#allocation5 + $0xa8] sm:$0xff] %v613
    %646 = vst [vmem:[#allocation5 + $0xb0] sm:$0xff] %v614
    %647 = vst [vmem:[#allocation5 + $0xb8] sm:$0xff] %v615
    %648 = vst [vmem:[#allocation5 + $0xc0] sm:$0xff] %v616
    %649 = vst [vmem:[#allocation5 + $0xc8] sm:$0xff] %v617
    %650 = vst [vmem:[#allocation5 + $0xd0] sm:$0xff] %v618
    %651 = vst [vmem:[#allocation5 + $0xd8] sm:$0xff] %v619
    %652 = vst [vmem:[#allocation5 + $0xe0] sm:$0xff] %v620
    %653 = vst [vmem:[#allocation5 + $0xe8] sm:$0xff] %v621
    %654 = vst [vmem:[#allocation5 + $0xf0] sm:$0xff] %v622
    %655 = vst [vmem:[#allocation5 + $0xf8] sm:$0xff] %v623
    // Predicated region
    $region18: #{tpu_custom_call.1} parent=1 // pred_check
      _
    $region19: #{tpu_custom_call.1} parent=1 // pred_check_branch
      %657 = sbr.rel (0) target = $region21
    $region20: #{tpu_custom_call.1} parent=1 // pred_region
      %s659 = ssub.s32 4096, 4096
      %660 = vsyncadd [#allocation4], %s659
      %s661 = sshll.u32 [#allocation5], 4
      %s662 = int_to_ptr.vmem [resolvable:$true] %s661
      %667 = dma.vmem_to_hbm [thread:$0]  %s662, 4096, %s3, [#allocation4], 128, 128, 8
    $region21: #{tpu_custom_call.1} parent=1 // pred_fallthru
      _
    // Predicated region
    $region22: #{tpu_custom_call.1} parent=1 // pred_check
      _
    $region23: #{tpu_custom_call.1} parent=1 // pred_check_branch
      %669 = sbr.rel (0) target = $region25
    $region24: #{tpu_custom_call.1} parent=1 // pred_region
      %670 = dma.done [#allocation4], 4096
    $region25: #{tpu_custom_call.1} parent=1 // pred_fallthru
      _
    %671 = vsyncpa [#allocation3], 1
    %672 = vsyncpa [#allocation4], 1

</llo_original>
